<compile_context>
chip_gen: v7x
topology: tpu7x:2x2x1
jax: 0.10.0
libtpu: 0.0.40
codegen_flags: <defaults>
</compile_context>

<pallas_src>
import jax
import jax.numpy as jnp
from jax.experimental import pallas as pl
from jax.experimental.pallas import tpu as pltpu

LANES = 128
MAX_TILE_ROWS = 2048          # 2048 x 128 f32 = 1 MiB per input block
MIN_PARALLEL_BLOCKS = 4       # keep >= 4 blocks so megacore can split the grid

P1, B1 = 10.0, 0.6
P2, B2 = 10.0, 0.3


def _cdiv(a, b):
    return -(-a // b)


def _round_up(x, m):
    return _cdiv(x, m) * m


def _sigmoid(x):
    # sigmoid(x) == 0.5*(tanh(x/2)+1): keeps the transcendental on the EUP.
    return 0.5 * (jnp.tanh(0.5 * x) + 1.0)


def _partial_sums_kernel(inter_ref, union_ref, target_ref, out_ref):
    """Per-block partial sums, reduced over rows (sublanes), kept per-lane.

    out_ref block (1, 4, 128) f32:
      row 0: sum_rows(t_A * inter)    row 1: sum_rows(t_A)
      row 2: sum_rows(t_U * target)   row 3: sum_rows(target)
    """
    t = target_ref[...].astype(jnp.float32)
    inter = inter_ref[...].astype(jnp.float32)
    union = union_ref[...].astype(jnp.float32)

    t_a = _sigmoid(-P1 * (t - B1))
    t_u = _sigmoid(-P2 * (union - B2))

    out_ref[0, 0, :] = jnp.sum(t_a * inter, axis=0)
    out_ref[0, 1, :] = jnp.sum(t_a, axis=0)
    out_ref[0, 2, :] = jnp.sum(t_u * t, axis=0)
    out_ref[0, 3, :] = jnp.sum(t, axis=0)


def _as_blocks(x, padded_n):
    flat = jnp.ravel(x)                      # free for contiguous arrays
    if padded_n != flat.size:                # pad only when actually needed
        flat = jnp.pad(flat, (0, padded_n - flat.size))
    return flat.reshape(-1, LANES)


@jax.jit
def at_loss(inter_input, union_input, target):
    """Returns (total_loss, loss1, loss2) as float32 scalars."""
    n = target.size
    assert n > 0, "empty input"
    assert inter_input.size == n and union_input.size == n, \
        "element counts must match"

    rows = _cdiv(n, LANES)
    # Big tiles to amortize per-step overhead, but keep >= MIN_PARALLEL_BLOCKS
    # blocks (when possible) so both TensorCores get work on megacore chips.
    block_rows = min(MAX_TILE_ROWS,
                     _round_up(max(_cdiv(rows, MIN_PARALLEL_BLOCKS), 1), 8))
    num_blocks = _cdiv(rows, block_rows)
    padded_n = num_blocks * block_rows * LANES

    inter2d = _as_blocks(inter_input, padded_n)
    union2d = _as_blocks(union_input, padded_n)
    target2d = _as_blocks(target, padded_n)

    in_spec = pl.BlockSpec((block_rows, LANES), lambda i: (i, 0))

    partial = pl.pallas_call(
        _partial_sums_kernel,
        out_shape=jax.ShapeDtypeStruct((num_blocks, 4, LANES), jnp.float32),
        grid=(num_blocks,),
        in_specs=[in_spec, in_spec, in_spec],
        out_specs=pl.BlockSpec((1, 4, LANES), lambda i: (i, 0, 0)),
        compiler_params=pltpu.CompilerParams(
            dimension_semantics=("parallel",),
            vmem_limit_bytes=32 * 1024 * 1024),
    )(inter2d, union2d, target2d)

    # Tiny epilogue: reduce per-block / per-lane partial sums and divide.
    sums = jnp.sum(partial, axis=(0, 2))          # (4,)
    sum_ta = sums[1]
    pad = padded_n - n
    if pad:  # compile-time: padded zeros only perturb sum(t_A); exact fix-up.
        sum_ta = sum_ta - jnp.float32(pad) * _sigmoid(jnp.float32(P1 * B1))
    loss1 = -sums[0] / sum_ta
    loss2 = -sums[2] / sums[3]
    return loss1 + loss2, loss1, loss2


def _at_loss_ref(inter_input, union_input, target):
    t = target.astype(jnp.float32)
    inter = inter_input.astype(jnp.float32)
    union = union_input.astype(jnp.float32)
    t_a = jax.nn.sigmoid(-P1 * (t - B1))
    loss1 = -jnp.sum(jnp.ravel(t_a) * jnp.ravel(inter)) / jnp.sum(t_a)
    t_u = jax.nn.sigmoid(-P2 * (union - B2))
    loss2 = -jnp.sum(jnp.ravel(t_u) * jnp.ravel(t)) / jnp.sum(t)
    return loss1 + loss2, loss1, loss2


if __name__ == "__main__":
    key = jax.random.PRNGKey(0)
    k1, k2, k3, k4, k5, k6 = jax.random.split(key, 6)

    # Case 1: NCHW shape as the PyTorch module would receive (lane-aligned).
    shape = (2, 4, 16, 16)
    inter_input = jax.random.uniform(k1, shape, jnp.float32)
    union_input = jax.random.uniform(k2, shape, jnp.float32)
    target = jax.random.uniform(k3, shape, jnp.float32)

    total, loss1, loss2 = at_loss(inter_input, union_input, target)
    jax.block_until_ready(total)

    # Mirror the module's print side-effect (host-side, outside jit).
    print("intersection loss : ", float(loss1), "union loss : ", float(loss2))

    ref_total, _, _ = _at_loss_ref(inter_input, union_input, target)
    assert jnp.allclose(total, ref_total, rtol=1e-5, atol=1e-5), (total, ref_total)

    # Case 2: ragged element count — exercises the epilogue pad correction.
    shape2 = (2, 3, 7, 11)  # 462 elements, not a multiple of 128
    i2 = jax.random.uniform(k4, shape2, jnp.float32)
    u2 = jax.random.uniform(k5, shape2, jnp.float32)
    t2 = jax.random.uniform(k6, shape2, jnp.float32)
    total2, _, _ = at_loss(i2, u2, t2)
    jax.block_until_ready(total2)
    ref2, _, _ = _at_loss_ref(i2, u2, t2)
    assert jnp.allclose(total2, ref2, rtol=1e-5, atol=1e-5), (total2, ref2)

    print("KERNEL_OK")
</pallas_src>

<mosaic_0001>
module attributes {stable_mosaic.version = 11 : i64} {
  func.func @_partial_sums_kernel(%arg0: i32, %arg1: memref<8x128xf32, #tpu.memory_space<vmem>>, %arg2: memref<8x128xf32, #tpu.memory_space<vmem>>, %arg3: memref<8x128xf32, #tpu.memory_space<vmem>>, %arg4: memref<1x4x128xf32, #tpu.memory_space<vmem>>) attributes {dimension_semantics = [#tpu.dimension_semantics<parallel>], iteration_bounds = array<i64: 2>, scalar_prefetch = 0 : i64, scratch_operands = 0 : i64, tpu.core_type = #tpu.core_type<tc>, window_params = [{transform_indices = @transform_0, window_bounds = array<i64: 8, 128>}, {transform_indices = @transform_1, window_bounds = array<i64: 8, 128>}, {transform_indices = @transform_2, window_bounds = array<i64: 8, 128>}, {transform_indices = @transform_3, window_bounds = array<i64: 1, 4, 128>}]} {
    %c0 = arith.constant 0 : index
    %c0_0 = arith.constant 0 : index
    %0 = vector.load %arg3[%c0, %c0_0] : memref<8x128xf32, #tpu.memory_space<vmem>>, vector<8x128xf32>
    %c0_1 = arith.constant 0 : index
    %c0_2 = arith.constant 0 : index
    %1 = vector.load %arg1[%c0_1, %c0_2] : memref<8x128xf32, #tpu.memory_space<vmem>>, vector<8x128xf32>
    %c0_3 = arith.constant 0 : index
    %c0_4 = arith.constant 0 : index
    %2 = vector.load %arg2[%c0_3, %c0_4] : memref<8x128xf32, #tpu.memory_space<vmem>>, vector<8x128xf32>
    %cst = arith.constant 6.000000e-01 : f32
    %3 = vector.broadcast %cst : f32 to vector<8x128xf32>
    %4 = arith.subf %0, %3 : vector<8x128xf32>
    %cst_5 = arith.constant -1.000000e+01 : f32
    %5 = vector.broadcast %cst_5 : f32 to vector<8x128xf32>
    %6 = arith.mulf %5, %4 : vector<8x128xf32>
    %cst_6 = arith.constant 5.000000e-01 : f32
    %7 = vector.broadcast %cst_6 : f32 to vector<8x128xf32>
    %8 = arith.mulf %7, %6 : vector<8x128xf32>
    %9 = math.tanh %8 : vector<8x128xf32>
    %cst_7 = arith.constant 1.000000e+00 : f32
    %10 = vector.broadcast %cst_7 : f32 to vector<8x128xf32>
    %11 = arith.addf %9, %10 : vector<8x128xf32>
    %cst_8 = arith.constant 5.000000e-01 : f32
    %12 = vector.broadcast %cst_8 : f32 to vector<8x128xf32>
    %13 = arith.mulf %12, %11 : vector<8x128xf32>
    %cst_9 = arith.constant 3.000000e-01 : f32
    %14 = vector.broadcast %cst_9 : f32 to vector<8x128xf32>
    %15 = arith.subf %2, %14 : vector<8x128xf32>
    %cst_10 = arith.constant -1.000000e+01 : f32
    %16 = vector.broadcast %cst_10 : f32 to vector<8x128xf32>
    %17 = arith.mulf %16, %15 : vector<8x128xf32>
    %cst_11 = arith.constant 5.000000e-01 : f32
    %18 = vector.broadcast %cst_11 : f32 to vector<8x128xf32>
    %19 = arith.mulf %18, %17 : vector<8x128xf32>
    %20 = math.tanh %19 : vector<8x128xf32>
    %cst_12 = arith.constant 1.000000e+00 : f32
    %21 = vector.broadcast %cst_12 : f32 to vector<8x128xf32>
    %22 = arith.addf %20, %21 : vector<8x128xf32>
    %cst_13 = arith.constant 5.000000e-01 : f32
    %23 = vector.broadcast %cst_13 : f32 to vector<8x128xf32>
    %24 = arith.mulf %23, %22 : vector<8x128xf32>
    %25 = arith.mulf %13, %1 : vector<8x128xf32>
    %cst_14 = arith.constant dense<0.000000e+00> : vector<128xf32>
    %26 = vector.multi_reduction <add>, %25, %cst_14 [0] : vector<8x128xf32> to vector<128xf32>
    %c0_15 = arith.constant 0 : index
    %c0_16 = arith.constant 0 : index
    %c0_17 = arith.constant 0 : index
    %27 = vector.load %arg4[%c0_15, %c0_16, %c0_17] : memref<1x4x128xf32, #tpu.memory_space<vmem>>, vector<1x1x128xf32>
    %28 = vector.shape_cast %27 : vector<1x1x128xf32> to vector<128xf32>
    %29 = vector.shape_cast %26 : vector<128xf32> to vector<1x1x128xf32>
    tpu.vector_store %arg4[%c0_15, %c0_16, %c0_17], %29 {strides = array<i32>} : memref<1x4x128xf32, #tpu.memory_space<vmem>>, vector<1x1x128xf32>,
    %cst_18 = arith.constant dense<0.000000e+00> : vector<128xf32>
    %30 = vector.multi_reduction <add>, %13, %cst_18 [0] : vector<8x128xf32> to vector<128xf32>
    %c0_19 = arith.constant 0 : index
    %c1 = arith.constant 1 : index
    %c0_20 = arith.constant 0 : index
    %31 = vector.load %arg4[%c0_19, %c1, %c0_20] : memref<1x4x128xf32, #tpu.memory_space<vmem>>, vector<1x1x128xf32>
    %32 = vector.shape_cast %31 : vector<1x1x128xf32> to vector<128xf32>
    %33 = vector.shape_cast %30 : vector<128xf32> to vector<1x1x128xf32>
    tpu.vector_store %arg4[%c0_19, %c1, %c0_20], %33 {strides = array<i32>} : memref<1x4x128xf32, #tpu.memory_space<vmem>>, vector<1x1x128xf32>,
    %34 = arith.mulf %24, %0 : vector<8x128xf32>
    %cst_21 = arith.constant dense<0.000000e+00> : vector<128xf32>
    %35 = vector.multi_reduction <add>, %34, %cst_21 [0] : vector<8x128xf32> to vector<128xf32>
    %c0_22 = arith.constant 0 : index
    %c2 = arith.constant 2 : index
    %c0_23 = arith.constant 0 : index
    %36 = vector.load %arg4[%c0_22, %c2, %c0_23] : memref<1x4x128xf32, #tpu.memory_space<vmem>>, vector<1x1x128xf32>
    %37 = vector.shape_cast %36 : vector<1x1x128xf32> to vector<128xf32>
    %38 = vector.shape_cast %35 : vector<128xf32> to vector<1x1x128xf32>
    tpu.vector_store %arg4[%c0_22, %c2, %c0_23], %38 {strides = array<i32>} : memref<1x4x128xf32, #tpu.memory_space<vmem>>, vector<1x1x128xf32>,
    %cst_24 = arith.constant dense<0.000000e+00> : vector<128xf32>
    %39 = vector.multi_reduction <add>, %0, %cst_24 [0] : vector<8x128xf32> to vector<128xf32>
    %c0_25 = arith.constant 0 : index
    %c3 = arith.constant 3 : index
    %c0_26 = arith.constant 0 : index
    %40 = vector.load %arg4[%c0_25, %c3, %c0_26] : memref<1x4x128xf32, #tpu.memory_space<vmem>>, vector<1x1x128xf32>
    %41 = vector.shape_cast %40 : vector<1x1x128xf32> to vector<128xf32>
    %42 = vector.shape_cast %39 : vector<128xf32> to vector<1x1x128xf32>
    tpu.vector_store %arg4[%c0_25, %c3, %c0_26], %42 {strides = array<i32>} : memref<1x4x128xf32, #tpu.memory_space<vmem>>, vector<1x1x128xf32>,
    return
  }
  func.func @transform_0(%arg0: i32) -> (i32, i32) {
    %c0_i32 = arith.constant 0 : i32
    %c0_i32_0 = arith.constant 0 : i32
    return %arg0, %c0_i32 : i32, i32
  }
  func.func @transform_1(%arg0: i32) -> (i32, i32) {
    %c0_i32 = arith.constant 0 : i32
    %c0_i32_0 = arith.constant 0 : i32
    return %arg0, %c0_i32 : i32, i32
  }
  func.func @transform_2(%arg0: i32) -> (i32, i32) {
    %c0_i32 = arith.constant 0 : i32
    %c0_i32_0 = arith.constant 0 : i32
    return %arg0, %c0_i32 : i32, i32
  }
  func.func @transform_3(%arg0: i32) -> (i32, i32, i32) {
    %c0_i32 = arith.constant 0 : i32
    %c0_i32_0 = arith.constant 0 : i32
    %c0_i32_1 = arith.constant 0 : i32
    return %arg0, %c0_i32, %c0_i32_0 : i32, i32, i32
  }
}

</mosaic_0001>

<llo_original>
// kernel: at_loss.1
$region0: #{at_loss.1}
  #allocation0 [shape = 'u32[]', space=smem, size = 0x4, offset = 0x4, fixed_abs, tag = 'smem constant byte address 0x4 - core index']
  #allocation1 [shape = 'u32[144,128]{1,0:T(1,128)}', space=vmem, size = 0x12000, scoped, tag = 'internal scratch']
  %s0 = inlined_call_operand.vmem [shape: f32[16,128], index: 0, kind: input, shape index: {}]
  %s1 = inlined_call_operand.vmem [shape: f32[16,128], index: 1, kind: input, shape index: {}]
  %s2 = inlined_call_operand.vmem [shape: f32[16,128], index: 2, kind: input, shape index: {}]
  %s3 = inlined_call_operand.vmem [shape: f32[2,4,128], index: 3, kind: output, shape index: {}]
  %s4 = sld [smem:[#allocation0]]
  $region45: #{at_loss.1} parent=0
    _
  %s6 = ssub.s32 1, %s4
  %s7 = scalar_select 0, %s6, %s4
  loop: start=0, step=1, limit=4
  $region2: #{at_loss.1} parent=0 // loop_pre_header
    _
  $region3: #{at_loss.1} parent=0 // loop_header
    %s9 = sphi 0, %s13
    %p10 = scmp.ge.s32.totalorder %s9, 4
    %s19 = sphi 0, %s21
    %s22 = sphi 0, %s19
    %s23 = sphi 0, %s22
    %s39 = sphi 0, %s23
    %s45 = sphi 0, %s47
    %s48 = sphi 0, %s45
    %s49 = sphi 0, %s48
    %s65 = sphi 0, %s49
    %s71 = sphi 0, %s73
    %s74 = sphi 0, %s71
    %s75 = sphi 0, %s74
    %s91 = sphi 0, %s75
    %s97 = sphi 0, %s99
    %s100 = sphi 0, %s97
    %s101 = sphi 0, %s100
    %s117 = sphi 0, %s101
  $region4: #{at_loss.1} parent=0 // loop_header_branch
    %12 = sbr.rel (%p10) target = $region8
  $region5: #{at_loss.1} parent=0 // loop_body
    %s14 = ssub.s32 %s9, 1
    %s15 = ssub.s32 %s9, 2
    %s16 = sadd.s32 %s9, 1
    %s17 = ssub.s32 %s9, %s16
    %p18 = scmp.eq.s32.totalorder %s17, 0
    %s20 = sadd.s32 %s19, 1
    %s21 = scalar_select %p18, %s19, %s20
    %p24 = pneg %p18
    %p25 = scmp.eq.s32.totalorder %s9, 1
    %p26 = por %p24, %p25
    %p27 = scmp.ne.s32.totalorder %s19, %s22
    %p28 = scmp.eq.s32.totalorder %s9, 0
    %p29 = por %p27, %p28
    %p30 = scmp.ne.s32.totalorder %s19, %s22
    %p31 = scmp.eq.s32.totalorder %s14, 1
    %p32 = por %p30, %p31
    %p33 = scmp.ne.s32.totalorder %s22, %s23
    %p34 = scmp.eq.s32.totalorder %s14, 0
    %p35 = por %p33, %p34
    %p36 = scmp.ne.s32.totalorder %s22, %s23
    %p37 = scmp.eq.s32.totalorder %s15, 1
    %p38 = por %p36, %p37
    %p40 = scmp.ne.s32.totalorder %s23, %s39
    %p41 = scmp.eq.s32.totalorder %s15, 0
    %p42 = por %p40, %p41
    %s43 = ssub.s32 %s9, %s16
    %p44 = scmp.eq.s32.totalorder %s43, 0
    %s46 = sadd.s32 %s45, 1
    %s47 = scalar_select %p44, %s45, %s46
    %p50 = pneg %p44
    %p51 = scmp.eq.s32.totalorder %s9, 1
    %p52 = por %p50, %p51
    %p53 = scmp.ne.s32.totalorder %s45, %s48
    %p54 = scmp.eq.s32.totalorder %s9, 0
    %p55 = por %p53, %p54
    %p56 = scmp.ne.s32.totalorder %s45, %s48
    %p57 = scmp.eq.s32.totalorder %s14, 1
    %p58 = por %p56, %p57
    %p59 = scmp.ne.s32.totalorder %s48, %s49
    %p60 = scmp.eq.s32.totalorder %s14, 0
    %p61 = por %p59, %p60
    %p62 = scmp.ne.s32.totalorder %s48, %s49
    %p63 = scmp.eq.s32.totalorder %s15, 1
    %p64 = por %p62, %p63
    %p66 = scmp.ne.s32.totalorder %s49, %s65
    %p67 = scmp.eq.s32.totalorder %s15, 0
    %p68 = por %p66, %p67
    %s69 = ssub.s32 %s9, %s16
    %p70 = scmp.eq.s32.totalorder %s69, 0
    %s72 = sadd.s32 %s71, 1
    %s73 = scalar_select %p70, %s71, %s72
    %p76 = pneg %p70
    %p77 = scmp.eq.s32.totalorder %s9, 1
    %p78 = por %p76, %p77
    %p79 = scmp.ne.s32.totalorder %s71, %s74
    %p80 = scmp.eq.s32.totalorder %s9, 0
    %p81 = por %p79, %p80
    %p82 = scmp.ne.s32.totalorder %s71, %s74
    %p83 = scmp.eq.s32.totalorder %s14, 1
    %p84 = por %p82, %p83
    %p85 = scmp.ne.s32.totalorder %s74, %s75
    %p86 = scmp.eq.s32.totalorder %s14, 0
    %p87 = por %p85, %p86
    %p88 = scmp.ne.s32.totalorder %s74, %s75
    %p89 = scmp.eq.s32.totalorder %s15, 1
    %p90 = por %p88, %p89
    %p92 = scmp.ne.s32.totalorder %s75, %s91
    %p93 = scmp.eq.s32.totalorder %s15, 0
    %p94 = por %p92, %p93
    %s95 = ssub.s32 %s9, %s16
    %p96 = scmp.eq.s32.totalorder %s95, 0
    %s98 = sadd.s32 %s97, 1
    %s99 = scalar_select %p96, %s97, %s98
    %p102 = pneg %p96
    %p103 = scmp.eq.s32.totalorder %s9, 1
    %p104 = por %p102, %p103
    %p105 = scmp.ne.s32.totalorder %s97, %s100
    %p106 = scmp.eq.s32.totalorder %s9, 0
    %p107 = por %p105, %p106
    %p108 = scmp.ne.s32.totalorder %s97, %s100
    %p109 = scmp.eq.s32.totalorder %s14, 1
    %p110 = por %p108, %p109
    %p111 = scmp.ne.s32.totalorder %s100, %s101
    %p112 = scmp.eq.s32.totalorder %s14, 0
    %p113 = por %p111, %p112
    %p114 = scmp.ne.s32.totalorder %s100, %s101
    %p115 = scmp.eq.s32.totalorder %s15, 1
    %p116 = por %p114, %p115
    %p118 = scmp.ne.s32.totalorder %s101, %s117
    %p119 = scmp.eq.s32.totalorder %s15, 0
    %p120 = por %p118, %p119
    %p121 = scmp.le.s32.totalorder 1, %s9
    %p122 = scmp.lt.s32.totalorder %s9, 3
    %p123 = pnand %p121, %p122
    %p124 = pneg %p123
    // Predicated region
    $region9: #{at_loss.1} parent=5 // pred_check
      _
    $region10: #{at_loss.1} parent=5 // pred_check_branch
      %126 = sbr.rel (%p123) target = $region12
    $region11: #{at_loss.1} parent=5 // pred_region
      %s127 = ssub.s32 %s9, 1
    $region12: #{at_loss.1} parent=5 // pred_fallthru
      _
    %p128 = scmp.lt.s32.totalorder %s9, 2
    // Predicated region
    $region13: #{at_loss.1} parent=5 // pred_check
      %p129 = pneg %p128
    $region14: #{at_loss.1} parent=5 // pred_check_branch
      %131 = sbr.rel (%p129) target = $region16
    $region15: #{at_loss.1} parent=5 // pred_region
      // Predicated region
      $region17: #{at_loss.1} parent=15 // pred_check
        %p132 = pneg %p29
      $region18: #{at_loss.1} parent=15 // pred_check_branch
        %134 = sbr.rel (%p132) target = $region20
      $region19: #{at_loss.1} parent=15 // pred_region
        %p135 = scmp.lt.s32.totalorder %s9, 1
        %s136 = scalar_select %p135, %s9, 1
        %s137 = smul.addr %s136, 8
        %s138 = scalar_lea.vmem %s0, %s137
      $region20: #{at_loss.1} parent=15 // pred_fallthru
        _
      // Predicated region
      $region21: #{at_loss.1} parent=15 // pred_check
        %p139 = pneg %p55
      $region22: #{at_loss.1} parent=15 // pred_check_branch
        %141 = sbr.rel (%p139) target = $region24
      $region23: #{at_loss.1} parent=15 // pred_region
        %p142 = scmp.lt.s32.totalorder %s9, 1
        %s143 = scalar_select %p142, %s9, 1
        %s144 = smul.addr %s143, 8
        %s145 = scalar_lea.vmem %s1, %s144
      $region24: #{at_loss.1} parent=15 // pred_fallthru
        _
      // Predicated region
      $region25: #{at_loss.1} parent=15 // pred_check
        %p146 = pneg %p81
      $region26: #{at_loss.1} parent=15 // pred_check_branch
        %148 = sbr.rel (%p146) target = $region28
      $region27: #{at_loss.1} parent=15 // pred_region
        %p149 = scmp.lt.s32.totalorder %s9, 1
        %s150 = scalar_select %p149, %s9, 1
        %s151 = smul.addr %s150, 8
        %s152 = scalar_lea.vmem %s2, %s151
      $region28: #{at_loss.1} parent=15 // pred_fallthru
        _
    $region16: #{at_loss.1} parent=5 // pred_fallthru
      _
    %p153 = scmp.le.s32.totalorder 1, %s9
    %p154 = scmp.lt.s32.totalorder %s9, 3
    %p155 = pnand %p153, %p154
    %p156 = pneg %p155
    // Predicated region
    $region29: #{at_loss.1} parent=5 // pred_check
      _
    $region30: #{at_loss.1} parent=5 // pred_check_branch
      %158 = sbr.rel (%p155) target = $region32
    $region31: #{at_loss.1} parent=5 // pred_region
      %s159 = ssub.s32 %s9, 1
      %p160 = scmp.lt.s32.totalorder %s14, 1
      %s161 = scalar_select %p160, %s14, 1
      %s162 = smul.addr %s161, 8
      %s163 = scalar_lea.vmem %s0, %s162
      %p164 = pneg %p35
      %p165 = pneg %p32
      %p166 = scmp.lt.s32.totalorder %s14, 1
      %s167 = scalar_select %p166, %s14, 1
      %s168 = smul.addr %s167, 8
      %s169 = scalar_lea.vmem %s1, %s168
      %p170 = pneg %p61
      %p171 = pneg %p58
      %p172 = scmp.lt.s32.totalorder %s14, 1
      %s173 = scalar_select %p172, %s14, 1
      %s174 = smul.addr %s173, 8
      %s175 = scalar_lea.vmem %s2, %s174
      %p176 = pneg %p87
      %p177 = pneg %p84
      %p178 = pneg %p113
      %p179 = pneg %p110
      %p180 = scmp.lt.s32.totalorder %s14, 1
      %s181 = scalar_select %p180, %s14, 1
      %s182 = smul.addr %s181, 4
      %s183 = scalar_lea.vmem %s3, %s182
      %p184 = scmp.lt.s32.totalorder %s14, 1
      %s185 = scalar_select %p184, %s14, 1
      %s186 = smul.addr %s185, 8
      %s187 = scalar_lea.vmem %s0, %s186
      %p188 = scmp.lt.s32.totalorder %s14, 1
      %s189 = scalar_select %p188, %s14, 1
      %s190 = smul.addr %s189, 8
      %s191 = scalar_lea.vmem %s1, %s190
      %p192 = scmp.lt.s32.totalorder %s14, 1
      %s193 = scalar_select %p192, %s14, 1
      %s194 = smul.addr %s193, 8
      %s195 = scalar_lea.vmem %s2, %s194
      %p196 = scmp.lt.s32.totalorder %s14, 1
      %s197 = scalar_select %p196, %s14, 1
      %s198 = smul.addr %s197, 4
      %s199 = scalar_lea.vmem %s3, %s198
      %v200 = vld [vmem:[%s195] sm:$0xff]
      %v201 = vld [vmem:[%s187] sm:$0xff]
      %v202 = vld [vmem:[%s191] sm:$0xff]
      %v203 = vsub.f32 %v200, 0.6
      %v204 = vmul.f32 %v203, -10.0
      %v205 = vmul.f32 %v204, 0.5
      %v206 = vtanh.pop %v205
      %v207 = vadd.f32 %v206, 1.0
      %v208 = vmul.f32 %v207, 0.5
      %v209 = vsub.f32 %v202, 0.3
      %v210 = vmul.f32 %v209, -10.0
      %v211 = vmul.f32 %v210, 0.5
      %v212 = vtanh.pop %v211
      %v213 = vadd.f32 %v212, 1.0
      %v214 = vmul.f32 %v213, 0.5
      %v215 = vmul.f32 %v208, %v201
      %v216 = vrot.slane %v215, 4
      %v217 = vadd.f32 %v215, %v216
      %v218 = vrot.slane %v217, 2
      %v219 = vadd.f32 %v217, %v218
      %v220 = vrot.slane %v219, 1
      %v221 = vadd.f32 %v219, %v220
      %222 = vst [vmem:[%s199] sm:$0x1] %v221
      %v223 = vrot.slane %v208, 4
      %v224 = vadd.f32 %v208, %v223
      %v225 = vrot.slane %v224, 2
      %v226 = vadd.f32 %v224, %v225
      %v227 = vrot.slane %v226, 1
      %v228 = vadd.f32 %v226, %v227
      %229 = vst [vmem:[%s199 + $0x1] sm:$0x1] %v228
      %v230 = vmul.f32 %v214, %v200
      %v231 = vrot.slane %v230, 4
      %v232 = vadd.f32 %v230, %v231
      %v233 = vrot.slane %v232, 2
      %v234 = vadd.f32 %v232, %v233
      %v235 = vrot.slane %v234, 1
      %v236 = vadd.f32 %v234, %v235
      %237 = vst [vmem:[%s199 + $0x2] sm:$0x1] %v236
      %v238 = vrot.slane %v200, 4
      %v239 = vadd.f32 %v200, %v238
      %v240 = vrot.slane %v239, 2
      %v241 = vadd.f32 %v239, %v240
      %v242 = vrot.slane %v241, 1
      %v243 = vadd.f32 %v241, %v242
      %244 = vst [vmem:[%s199 + $0x3] sm:$0x1] %v243
      %p245 = scmp.lt.s32.totalorder %s14, 1
      %s246 = scalar_select %p245, %s14, 1
      %s247 = smul.addr %s246, 4
      %s248 = scalar_lea.vmem %s3, %s247
      // Predicated region
      $region33: #{at_loss.1} parent=31 // pred_check
        %p249 = pneg %p110
      $region34: #{at_loss.1} parent=31 // pred_check_branch
        %251 = sbr.rel (%p249) target = $region36
      $region35: #{at_loss.1} parent=31 // pred_region
        _
      $region36: #{at_loss.1} parent=31 // pred_fallthru
        _
    $region32: #{at_loss.1} parent=5 // pred_fallthru
      _
    %p252 = scmp.le.s32.totalorder 2, %s9
    // Predicated region
    $region37: #{at_loss.1} parent=5 // pred_check
      %p253 = pneg %p252
    $region38: #{at_loss.1} parent=5 // pred_check_branch
      %255 = sbr.rel (%p253) target = $region40
    $region39: #{at_loss.1} parent=5 // pred_region
      %s256 = ssub.s32 %s9, 2
      // Predicated region
      $region41: #{at_loss.1} parent=39 // pred_check
        %p257 = pneg %p116
      $region42: #{at_loss.1} parent=39 // pred_check_branch
        %259 = sbr.rel (%p257) target = $region44
      $region43: #{at_loss.1} parent=39 // pred_region
        %p260 = scmp.lt.s32.totalorder %s15, 1
        %s261 = scalar_select %p260, %s15, 1
        %s262 = smul.addr %s261, 4
        %s263 = scalar_lea.vmem %s3, %s262
      $region44: #{at_loss.1} parent=39 // pred_fallthru
        _
    $region40: #{at_loss.1} parent=5 // pred_fallthru
      _
  $region6: #{at_loss.1} parent=0 // loop_footer
    %s13 = sadd.s32 1, %s9
  $region7: #{at_loss.1} parent=0 // loop_footer_branch
    %8 = sbr.rel target = $region3
  $region8: #{at_loss.1} parent=0 // loop_exit
    _

</llo_original>
